<compile_context>
chip_gen: v7x
topology: tpu7x:2x2x1
jax: 0.10.0
libtpu: 0.0.40
codegen_flags: <defaults>
</compile_context>

<pallas_src>
import functools

import jax
import jax.numpy as jnp
from jax.experimental import pallas as pl
from jax.experimental.pallas import tpu as pltpu

_BLOCK_BYTES_MIN = 1 << 20    # pred bytes per grid step, lower clamp
_BLOCK_BYTES_MAX = 6 << 20    # upper clamp (keeps all generations well in VMEM)


def _focal_kernel(pred_ref, tgt_ref, *rest, gamma, alpha, has_weight, num_classes):
    # pred_ref: (C, r, 128)  input dtype   -- class-major, samples lane-dense
    # tgt_ref : (r, 128)     int32
    # w_ref   : (r, 128)     f32           -- only when has_weight
    # out_ref : (r, 128)     f32
    if has_weight:
        w_ref, out_ref = rest
    else:
        (out_ref,) = rest

    logits = pred_ref[...].astype(jnp.float32)          # (C, r, 128)
    tgt = tgt_ref[...]                                   # (r, 128)

    # logit of the target class (assumes 0 <= target < C).
    if num_classes <= 32:
        # Small static C: unrolled selects on (r,128) rows (pure VPU).
        logit_t = jnp.where(tgt == 0, logits[0], 0.0)
        for ci in range(1, num_classes):
            logit_t = jnp.where(tgt == ci, logits[ci], logit_t)
    else:
        cls = jax.lax.broadcasted_iota(jnp.int32, logits.shape, 0)
        logit_t = jnp.sum(jnp.where(cls == tgt[None], logits, 0.0), axis=0)

    # cross entropy (reduction='none'): ce = logsumexp_c(logits) - logit_target
    m = jnp.max(logits, axis=0)                          # (r, 128)
    e = jnp.exp(logits - m[None])                        # single big EUP pass
    s = jnp.sum(e, axis=0)                               # (r, 128)
    ce = jnp.log(s) + (m - logit_t)

    # pt = softmax prob of the target class; reuse m/s instead of exp(-ce).
    pt = jnp.exp(logit_t - m) / s
    om = jnp.maximum(1.0 - pt, 0.0)                      # clamp rounding above 1

    g = float(gamma)
    if g == int(g) and g >= 0.0:
        gi = int(g)
        if gi == 0:
            mod = jnp.ones_like(om)
        else:
            mod = om
            for _ in range(gi - 1):                      # VALU multiply chain
                mod = mod * om
    else:
        mod = jnp.maximum(om, 1e-30) ** g                # avoid pow(0, g) NaN paths

    loss = (alpha * mod) * ce
    if has_weight:
        loss = loss * w_ref[...]
    out_ref[...] = loss


def _round_up(x, m):
    return -(-x // m) * m


def _vmem_capacity_bytes():
    try:
        info = pltpu.get_tpu_info()
        cap = getattr(info, "vmem_capacity_bytes", None)
        if cap:
            return int(cap)
    except Exception:
        pass
    return 64 << 20   # conservative (v7x-sized) fallback


def _per_sample_loss(pred, target, weight, *, gamma, alpha, pred_is_class_major=False):
    if pred_is_class_major:
        c, n = pred.shape
        pred_cn = pred                  # producer already emits (C, N): no transpose pass
    else:
        n, c = pred.shape
        pred_cn = pred.T                # one transpose pass, in pred's own dtype
    target = jnp.asarray(target, jnp.int32)

    itemsize = jnp.dtype(pred.dtype).itemsize
    sub = max(8, 32 // itemsize)        # sublane multiple for this dtype (f32:8, bf16:16)

    # Byte-budget tiling, sized from this chip's VMEM.
    vmem_cap = _vmem_capacity_bytes()
    block_bytes = int(min(_BLOCK_BYTES_MAX, max(_BLOCK_BYTES_MIN, vmem_cap // 24)))
    vmem_limit = int(min(64 << 20, max(32 << 20, vmem_cap // 2)))

    rows_needed = -(-n // 128)
    budget_rows = max(sub, (block_bytes // (c * 128 * itemsize)) // sub * sub)
    r_tile = min(budget_rows, _round_up(rows_needed, sub))
    steps = -(-rows_needed // r_tile)
    if steps == 1 and rows_needed > sub:
        steps = 2                        # keep both v7x TensorCores busy
        r_tile = _round_up(-(-rows_needed // 2), sub)
    n_rows = steps * r_tile
    n_pad = n_rows * 128

    # Free reshapes (row-major); single lane pad per stream; no class-axis pad,
    # no f32 cast, no -1e30 fill.
    pred_3d = jnp.pad(pred_cn, ((0, 0), (0, n_pad - n))).reshape(c, n_rows, 128)
    tgt_2d = jnp.pad(target, (0, n_pad - n)).reshape(n_rows, 128)

    in_specs = [
        pl.BlockSpec((c, r_tile, 128), lambda i: (0, i, 0)),
        pl.BlockSpec((r_tile, 128), lambda i: (i, 0)),
    ]
    inputs = [pred_3d, tgt_2d]
    has_weight = weight is not None
    if has_weight:
        w_2d = jnp.pad(jnp.asarray(weight, jnp.float32),
                       (0, n_pad - n)).reshape(n_rows, 128)
        in_specs.append(pl.BlockSpec((r_tile, 128), lambda i: (i, 0)))
        inputs.append(w_2d)
    # weight=None: no mask/weight stream at all; padded lanes are sliced off below.

    out = pl.pallas_call(
        functools.partial(_focal_kernel, gamma=gamma, alpha=alpha,
                          has_weight=has_weight, num_classes=c),
        out_shape=jax.ShapeDtypeStruct((n_rows, 128), jnp.float32),
        grid_spec=pltpu.PrefetchScalarGridSpec(
            num_scalar_prefetch=0,
            grid=(steps,),
            in_specs=in_specs,
            out_specs=pl.BlockSpec((r_tile, 128), lambda i: (i, 0)),
        ),
        compiler_params=pltpu.CompilerParams(
            dimension_semantics=("parallel",),
            vmem_limit_bytes=vmem_limit),
    )(*inputs)

    return out.reshape(n_pad)[:n]


def softmax_focal_loss(pred, target, weight=None, *, gamma=2.0, alpha=0.25,
                       reduction="mean", avg_factor=None, loss_weight=1.0,
                       pred_is_class_major=False):
    """Matches SoftMaxFocalLoss.forward (main path; negative_sample unsupported)."""
    per_sample = _per_sample_loss(pred, target, weight, gamma=gamma, alpha=alpha,
                                  pred_is_class_major=pred_is_class_major)
    # TODO(synk): negative_sample branch (host-side randperm negative sampling) not implemented.

    if weight is None:
        # The PyTorch module only applies weight_reduce_loss when weight is given;
        # with weight=None the unreduced per-sample loss is returned.
        return loss_weight * per_sample

    # weight already applied in-kernel; weight_reduce_loss reduction glue.
    # Note: reduction='mean' divides by N (not sum(weight)) — matches the module.
    if avg_factor is None:
        if reduction == "mean":
            out = jnp.mean(per_sample)
        elif reduction == "sum":
            out = jnp.sum(per_sample)
        else:
            out = per_sample
    else:
        if reduction == "mean":
            out = jnp.sum(per_sample) / avg_factor
        elif reduction == "none":
            out = per_sample
        else:
            raise ValueError("avg_factor can not be used with reduction='sum'")
    return loss_weight * out


def _reference(pred, target, weight, gamma, alpha, reduction,
               avg_factor=None, loss_weight=1.0):
    # pure-JAX reference of the PyTorch forward (main path)
    logp = jax.nn.log_softmax(pred, axis=-1)
    ce = -jnp.take_along_axis(logp, target[:, None], axis=-1)[:, 0]
    pt = jnp.exp(-ce)
    loss = alpha * (1.0 - pt) ** gamma * ce
    if weight is None:
        return loss_weight * loss
    loss = loss * weight
    if avg_factor is None:
        if reduction == "mean":
            loss = jnp.mean(loss)
        elif reduction == "sum":
            loss = jnp.sum(loss)
    else:
        if reduction == "mean":
            loss = jnp.sum(loss) / avg_factor
    return loss_weight * loss


if __name__ == "__main__":
    key = jax.random.PRNGKey(0)
    k1, k2, k3, k4, k5, k6 = jax.random.split(key, 6)

    N, C = 32, 4                       # 32 samples, 4 classes (det-head cls logits)
    pred = jax.random.normal(k1, (N, C), jnp.float32) * 2.0
    target = jax.random.randint(k2, (N,), 0, C, jnp.int32)
    weight = jax.random.uniform(k3, (N,), jnp.float32)

    # module defaults: gamma=2.0, alpha=0.25, reduction='mean', loss_weight=1.0
    out = jax.block_until_ready(
        softmax_focal_loss(pred, target, weight, gamma=2.0, alpha=0.25,
                           reduction="mean", loss_weight=1.0))
    ref = _reference(pred, target, weight, 2.0, 0.25, "mean")
    assert jnp.allclose(out, ref, rtol=1e-5, atol=1e-6), (out, ref)

    # weighted sum path
    out2 = jax.block_until_ready(
        softmax_focal_loss(pred, target, weight, reduction="sum"))
    ref2 = _reference(pred, target, weight, 2.0, 0.25, "sum")
    assert jnp.allclose(out2, ref2, rtol=1e-5, atol=1e-6), (out2, ref2)

    # weight=None: module returns the unreduced per-sample loss
    out3 = jax.block_until_ready(
        softmax_focal_loss(pred, target, None, reduction="mean"))
    ref3 = _reference(pred, target, None, 2.0, 0.25, "mean")
    assert out3.shape == (N,)
    assert jnp.allclose(out3, ref3, rtol=1e-5, atol=1e-6), (out3, ref3)

    # avg_factor path
    out4 = jax.block_until_ready(
        softmax_focal_loss(pred, target, weight, reduction="mean", avg_factor=10.0))
    ref4 = _reference(pred, target, weight, 2.0, 0.25, "mean", avg_factor=10.0)
    assert jnp.allclose(out4, ref4, rtol=1e-5, atol=1e-6), (out4, ref4)

    # class-major producer path (skips the wrapper transpose) must match
    out5 = jax.block_until_ready(
        softmax_focal_loss(pred.T, target, weight, reduction="mean",
                           pred_is_class_major=True))
    assert jnp.allclose(out5, ref, rtol=1e-5, atol=1e-6), (out5, ref)

    # larger case exercising a multi-step ("parallel") grid
    N2, C2 = 2000, 5
    pred2 = jax.random.normal(k4, (N2, C2), jnp.float32)
    target2 = jax.random.randint(k5, (N2,), 0, C2, jnp.int32)
    weight2 = jax.random.uniform(k6, (N2,), jnp.float32)
    out6 = jax.block_until_ready(
        softmax_focal_loss(pred2, target2, weight2, reduction="mean"))
    ref6 = _reference(pred2, target2, weight2, 2.0, 0.25, "mean")
    assert jnp.allclose(out6, ref6, rtol=1e-5, atol=1e-6), (out6, ref6)

    print("KERNEL_OK")
</pallas_src>

<mosaic_0001>
module attributes {stable_mosaic.version = 11 : i64} {
  func.func @_focal_kernel(%arg0: i32, %arg1: memref<4x8x128xf32, #tpu.memory_space<vmem>>, %arg2: memref<8x128xi32, #tpu.memory_space<vmem>>, %arg3: memref<8x128xf32, #tpu.memory_space<vmem>>, %arg4: memref<8x128xf32, #tpu.memory_space<vmem>>) attributes {dimension_semantics = [#tpu.dimension_semantics<parallel>], iteration_bounds = array<i64: 1>, scalar_prefetch = 0 : i64, scratch_operands = 0 : i64, tpu.core_type = #tpu.core_type<tc>, window_params = [{transform_indices = @transform_0, window_bounds = array<i64: 4, 8, 128>}, {transform_indices = @transform_1, window_bounds = array<i64: 8, 128>}, {transform_indices = @transform_2, window_bounds = array<i64: 8, 128>}, {transform_indices = @transform_3, window_bounds = array<i64: 8, 128>}]} {
    %c0 = arith.constant 0 : index
    %c0_0 = arith.constant 0 : index
    %c0_1 = arith.constant 0 : index
    %0 = vector.load %arg1[%c0, %c0_0, %c0_1] : memref<4x8x128xf32, #tpu.memory_space<vmem>>, vector<4x8x128xf32>
    %c0_2 = arith.constant 0 : index
    %c0_3 = arith.constant 0 : index
    %1 = vector.load %arg2[%c0_2, %c0_3] : memref<8x128xi32, #tpu.memory_space<vmem>>, vector<8x128xi32>
    %c0_i32 = arith.constant 0 : i32
    %2 = vector.broadcast %c0_i32 : i32 to vector<8x128xi32>
    %3 = arith.cmpi eq, %1, %2 : vector<8x128xi32>
    %4 = vector.extract_strided_slice %0 {offsets = [0, 0, 0], sizes = [1, 8, 128], strides = [1, 1, 1]} : vector<4x8x128xf32> to vector<1x8x128xf32>
    %5 = vector.shape_cast %4 : vector<1x8x128xf32> to vector<8x128xf32>
    %cst = arith.constant 0.000000e+00 : f32
    %6 = vector.broadcast %cst : f32 to vector<8x128xf32>
    %7 = arith.select %3, %5, %6 : vector<8x128xi1>, vector<8x128xf32>
    %c1_i32 = arith.constant 1 : i32
    %8 = vector.broadcast %c1_i32 : i32 to vector<8x128xi32>
    %9 = arith.cmpi eq, %1, %8 : vector<8x128xi32>
    %10 = vector.extract_strided_slice %0 {offsets = [1, 0, 0], sizes = [1, 8, 128], strides = [1, 1, 1]} : vector<4x8x128xf32> to vector<1x8x128xf32>
    %11 = vector.shape_cast %10 : vector<1x8x128xf32> to vector<8x128xf32>
    %12 = arith.select %9, %11, %7 : vector<8x128xi1>, vector<8x128xf32>
    %c2_i32 = arith.constant 2 : i32
    %13 = vector.broadcast %c2_i32 : i32 to vector<8x128xi32>
    %14 = arith.cmpi eq, %1, %13 : vector<8x128xi32>
    %15 = vector.extract_strided_slice %0 {offsets = [2, 0, 0], sizes = [1, 8, 128], strides = [1, 1, 1]} : vector<4x8x128xf32> to vector<1x8x128xf32>
    %16 = vector.shape_cast %15 : vector<1x8x128xf32> to vector<8x128xf32>
    %17 = arith.select %14, %16, %12 : vector<8x128xi1>, vector<8x128xf32>
    %c3_i32 = arith.constant 3 : i32
    %18 = vector.broadcast %c3_i32 : i32 to vector<8x128xi32>
    %19 = arith.cmpi eq, %1, %18 : vector<8x128xi32>
    %20 = vector.extract_strided_slice %0 {offsets = [3, 0, 0], sizes = [1, 8, 128], strides = [1, 1, 1]} : vector<4x8x128xf32> to vector<1x8x128xf32>
    %21 = vector.shape_cast %20 : vector<1x8x128xf32> to vector<8x128xf32>
    %22 = arith.select %19, %21, %17 : vector<8x128xi1>, vector<8x128xf32>
    %cst_4 = arith.constant dense<0xFF800000> : vector<8x128xf32>
    %23 = vector.multi_reduction <maximumf>, %0, %cst_4 [0] : vector<4x8x128xf32> to vector<8x128xf32>
    %24 = vector.shape_cast %23 : vector<8x128xf32> to vector<1x8x128xf32>
    %25 = vector.broadcast %24 : vector<1x8x128xf32> to vector<4x8x128xf32>
    %26 = arith.subf %0, %25 : vector<4x8x128xf32>
    %27 = math.exp %26 : vector<4x8x128xf32>
    %cst_5 = arith.constant dense<0.000000e+00> : vector<8x128xf32>
    %28 = vector.multi_reduction <add>, %27, %cst_5 [0] : vector<4x8x128xf32> to vector<8x128xf32>
    %29 = math.log %28 : vector<8x128xf32>
    %30 = arith.subf %23, %22 : vector<8x128xf32>
    %31 = arith.addf %29, %30 : vector<8x128xf32>
    %32 = arith.subf %22, %23 : vector<8x128xf32>
    %33 = math.exp %32 : vector<8x128xf32>
    %34 = arith.divf %33, %28 : vector<8x128xf32>
    %cst_6 = arith.constant 1.000000e+00 : f32
    %35 = vector.broadcast %cst_6 : f32 to vector<8x128xf32>
    %36 = arith.subf %35, %34 : vector<8x128xf32>
    %cst_7 = arith.constant 0.000000e+00 : f32
    %37 = vector.broadcast %cst_7 : f32 to vector<8x128xf32>
    %38 = arith.maximumf %36, %37 : vector<8x128xf32>
    %39 = arith.mulf %38, %38 : vector<8x128xf32>
    %cst_8 = arith.constant 2.500000e-01 : f32
    %40 = vector.broadcast %cst_8 : f32 to vector<8x128xf32>
    %41 = arith.mulf %40, %39 : vector<8x128xf32>
    %42 = arith.mulf %41, %31 : vector<8x128xf32>
    %c0_9 = arith.constant 0 : index
    %c0_10 = arith.constant 0 : index
    %43 = vector.load %arg3[%c0_9, %c0_10] : memref<8x128xf32, #tpu.memory_space<vmem>>, vector<8x128xf32>
    %44 = arith.mulf %42, %43 : vector<8x128xf32>
    %c0_11 = arith.constant 0 : index
    %c0_12 = arith.constant 0 : index
    %45 = vector.load %arg4[%c0_11, %c0_12] : memref<8x128xf32, #tpu.memory_space<vmem>>, vector<8x128xf32>
    tpu.vector_store %arg4[%c0_11, %c0_12], %44 {strides = array<i32>} : memref<8x128xf32, #tpu.memory_space<vmem>>, vector<8x128xf32>,
    return
  }
  func.func @transform_0(%arg0: i32) -> (i32, i32, i32) {
    %c0_i32 = arith.constant 0 : i32
    %c0_i32_0 = arith.constant 0 : i32
    %c0_i32_1 = arith.constant 0 : i32
    return %c0_i32, %arg0, %c0_i32_0 : i32, i32, i32
  }
  func.func @transform_1(%arg0: i32) -> (i32, i32) {
    %c0_i32 = arith.constant 0 : i32
    %c0_i32_0 = arith.constant 0 : i32
    return %arg0, %c0_i32 : i32, i32
  }
  func.func @transform_2(%arg0: i32) -> (i32, i32) {
    %c0_i32 = arith.constant 0 : i32
    %c0_i32_0 = arith.constant 0 : i32
    return %arg0, %c0_i32 : i32, i32
  }
  func.func @transform_3(%arg0: i32) -> (i32, i32) {
    %c0_i32 = arith.constant 0 : i32
    %c0_i32_0 = arith.constant 0 : i32
    return %arg0, %c0_i32 : i32, i32
  }
}

</mosaic_0001>

<llo_original>
// kernel: tpu_custom_call.1
$region0: #{tpu_custom_call.1}
  #allocation0 [shape = 'u32[]', space=smem, size = 0x4, offset = 0x4, fixed_abs, tag = 'smem constant byte address 0x4 - core index']
  #allocation1 [shape = 'u32[144,128]{1,0:T(1,128)}', space=vmem, size = 0x12000, scoped, tag = 'internal scratch']
  %s0 = inlined_call_operand.hbm [shape: f32[4,8,128], index: 0, kind: input, shape index: {}]
  %s1 = inlined_call_operand.hbm [shape: s32[8,128], index: 1, kind: input, shape index: {}]
  %s2 = inlined_call_operand.hbm [shape: f32[8,128], index: 2, kind: input, shape index: {}]
  %s3 = inlined_call_operand.hbm [shape: f32[8,128], index: 3, kind: output, shape index: {}]
  %s4 = sld [smem:[#allocation0]]
  $region34: #{tpu_custom_call.1} parent=0
    _
  %s6 = ssub.s32 1, %s4
  %s7 = scalar_select 0, %s6, %s4
  $region1: #{tpu_custom_call.1} parent=0
    #allocation2 [shape = 'u8[16384]{0}', space=vmem, size = 0x4000, scoped, tag = 'input window, operand 0, single buffered']
    #allocation3 [shape = 's32[1]{0}', space=sflag, size = 0x4, scoped, tag = 'scoped memory for tpu_custom_call.1']
    #allocation4 [shape = 's32[1]{0}', space=sflag, size = 0x4, scoped, tag = 'scoped memory for tpu_custom_call.1']
    #allocation5 [shape = 'u8[4096]{0}', space=vmem, size = 0x1000, scoped, tag = 'input window, operand 1, single buffered']
    #allocation6 [shape = 's32[1]{0}', space=sflag, size = 0x4, scoped, tag = 'scoped memory for tpu_custom_call.1']
    #allocation7 [shape = 'u8[4096]{0}', space=vmem, size = 0x1000, scoped, tag = 'input window, operand 2, single buffered']
    #allocation8 [shape = 'u8[4096]{0}', space=vmem, size = 0x1000, scoped, tag = 'output window, operand 0, single buffered']
    %8 = vsyncpa [#allocation3], 0
    %9 = vsyncpa [#allocation6], 0
    %10 = vsyncpa [#allocation4], 0
    // Predicated region
    $region2: #{tpu_custom_call.1} parent=1 // pred_check
      _
    $region3: #{tpu_custom_call.1} parent=1 // pred_check_branch
      %12 = sbr.rel (0) target = $region5
    $region4: #{tpu_custom_call.1} parent=1 // pred_region
      %s14 = ssub.s32 512, 512
      %15 = vsyncadd [#allocation3], %s14
      %s16 = sshll.u32 [#allocation2], 4
      %s17 = int_to_ptr.vmem [resolvable:$true] %s16
      %22 = dma.hbm_to_vmem [thread:$0]  %s0, 512, %s17, [#allocation3], 128, 128, 8
    $region5: #{tpu_custom_call.1} parent=1 // pred_fallthru
      _
    // Predicated region
    $region6: #{tpu_custom_call.1} parent=1 // pred_check
      _
    $region7: #{tpu_custom_call.1} parent=1 // pred_check_branch
      %24 = sbr.rel (0) target = $region9
    $region8: #{tpu_custom_call.1} parent=1 // pred_region
      %s26 = ssub.s32 128, 128
      %27 = vsyncadd [#allocation6], %s26
      %s29 = sshll.u32 [#allocation5], 4
      %s30 = int_to_ptr.vmem [resolvable:$true] %s29
      %32 = dma.hbm_to_vmem [thread:$0]  %s1, 128, %s30, [#allocation6]
    $region9: #{tpu_custom_call.1} parent=1 // pred_fallthru
      _
    // Predicated region
    $region10: #{tpu_custom_call.1} parent=1 // pred_check
      _
    $region11: #{tpu_custom_call.1} parent=1 // pred_check_branch
      %34 = sbr.rel (0) target = $region13
    $region12: #{tpu_custom_call.1} parent=1 // pred_region
      %s36 = ssub.s32 128, 128
      %37 = vsyncadd [#allocation6], %s36
      %s39 = sshll.u32 [#allocation7], 4
      %s40 = int_to_ptr.vmem [resolvable:$true] %s39
      %42 = dma.hbm_to_vmem [thread:$0]  %s2, 128, %s40, [#allocation6]
    $region13: #{tpu_custom_call.1} parent=1 // pred_fallthru
      _
    // Predicated region
    $region14: #{tpu_custom_call.1} parent=1 // pred_check
      _
    $region15: #{tpu_custom_call.1} parent=1 // pred_check_branch
      %44 = sbr.rel (0) target = $region17
    $region16: #{tpu_custom_call.1} parent=1 // pred_region
      %45 = dma.done [#allocation3], 512
    $region17: #{tpu_custom_call.1} parent=1 // pred_fallthru
      _
    // Predicated region
    $region18: #{tpu_custom_call.1} parent=1 // pred_check
      _
    $region19: #{tpu_custom_call.1} parent=1 // pred_check_branch
      %47 = sbr.rel (0) target = $region21
    $region20: #{tpu_custom_call.1} parent=1 // pred_region
      %48 = dma.done [#allocation6], 128
    $region21: #{tpu_custom_call.1} parent=1 // pred_fallthru
      _
    // Predicated region
    $region22: #{tpu_custom_call.1} parent=1 // pred_check
      _
    $region23: #{tpu_custom_call.1} parent=1 // pred_check_branch
      %50 = sbr.rel (0) target = $region25
    $region24: #{tpu_custom_call.1} parent=1 // pred_region
      %51 = dma.done [#allocation6], 128
    $region25: #{tpu_custom_call.1} parent=1 // pred_fallthru
      _
    %v52 = vld [vmem:[#allocation2] sm:$0xff]
    %v53 = vld [vmem:[#allocation2 + $0x8] sm:$0xff]
    %v54 = vld [vmem:[#allocation2 + $0x10] sm:$0xff]
    %v55 = vld [vmem:[#allocation2 + $0x18] sm:$0xff]
    %v56 = vld [vmem:[#allocation5] sm:$0xff]
    %vm57 = vcmp.eq.s32.totalorder %v56, 0
    %v58 = vsel %vm57, %v52, 0.0
    %vm59 = vcmp.eq.s32.totalorder %v56, 1
    %v60 = vsel %vm59, %v53, %v58
    %vm61 = vcmp.eq.s32.totalorder %v56, 2
    %v62 = vsel %vm61, %v54, %v60
    %vm63 = vcmp.eq.s32.totalorder %v56, 3
    %v64 = vsel %vm63, %v55, %v62
    %v65 = vmax.f32 %v52, %v53
    %v66 = vmax.f32 %v54, %v55
    %v67 = vmax.f32 %v65, %v66
    %v68 = vsub.f32 %v52, %v67
    %v69 = vsub.f32 %v53, %v67
    %v70 = vsub.f32 %v54, %v67
    %v71 = vsub.f32 %v55, %v67
    %v72 = vmul.f32 %v68, 1.442695
    %v73 = vpow.pop %v72
    %v74 = vmul.f32 %v69, 1.442695
    %v75 = vpow.pop %v74
    %v76 = vmul.f32 %v70, 1.442695
    %v77 = vpow.pop %v76
    %v78 = vmul.f32 %v71, 1.442695
    %v79 = vpow.pop %v78
    %v80 = vadd.f32 %v73, %v75
    %v81 = vadd.f32 %v80, %v77
    %v82 = vadd.f32 %v81, %v79
    %v83 = vlog2.pop %v82
    %v84 = vmul.f32 %v83, 0.6931472
    %v85 = vsub.f32 %v67, %v64
    %v86 = vadd.f32 %v84, %v85
    %v87 = vsub.f32 %v64, %v67
    %v88 = vmul.f32 %v87, 1.442695
    %v89 = vpow.pop %v88
    %v90 = vrcp.pop %v82
    %v91 = vmul.f32 %v89, %v90
    %v92 = vsub.f32 1.0, %v91
    %v93 = vmax.f32 %v92, 0.0
    %v94 = vmul.f32 %v93, %v93
    %v95 = vmul.f32 %v94, 0.25
    %v96 = vmul.f32 %v95, %v86
    %v97 = vld [vmem:[#allocation7] sm:$0xff]
    %v98 = vmul.f32 %v96, %v97
    %99 = vst [vmem:[#allocation8] sm:$0xff] %v98
    // Predicated region
    $region26: #{tpu_custom_call.1} parent=1 // pred_check
      _
    $region27: #{tpu_custom_call.1} parent=1 // pred_check_branch
      %101 = sbr.rel (0) target = $region29
    $region28: #{tpu_custom_call.1} parent=1 // pred_region
      %s103 = ssub.s32 128, 128
      %104 = vsyncadd [#allocation4], %s103
      %s106 = sshll.u32 [#allocation8], 4
      %s107 = int_to_ptr.vmem [resolvable:$true] %s106
      %109 = dma.vmem_to_hbm [thread:$0]  %s107, 128, %s3, [#allocation4]
    $region29: #{tpu_custom_call.1} parent=1 // pred_fallthru
      _
    // Predicated region
    $region30: #{tpu_custom_call.1} parent=1 // pred_check
      _
    $region31: #{tpu_custom_call.1} parent=1 // pred_check_branch
      %111 = sbr.rel (0) target = $region33
    $region32: #{tpu_custom_call.1} parent=1 // pred_region
      %112 = dma.done [#allocation4], 128
    $region33: #{tpu_custom_call.1} parent=1 // pred_fallthru
      _
    %113 = vsyncpa [#allocation3], 1
    %114 = vsyncpa [#allocation6], 1
    %115 = vsyncpa [#allocation4], 1

</llo_original>
